<compile_context>
chip_gen: v6e
topology: v6e:2x2x1
jax: 0.10.0
libtpu: 0.0.40
codegen_flags: <defaults>
</compile_context>

<pallas_src>
import functools

import jax
import jax.numpy as jnp
from jax.experimental import pallas as pl
from jax.experimental.pallas import tpu as pltpu


def _round_up(x, m):
    return -(-x // m) * m


def _pick_row_tile(H, W, Wpad, CT, itemsize):
    """Largest divisor of H whose strip keeps the vreg live set <= ~192 KiB."""
    # Live set per strip ~= f32 acc (HT*W*CT) + band + rolled band (HT*Wpad*CT each).
    per_row = (W + 2 * Wpad) * CT * max(itemsize, 4)
    target = max(1, min(H, (192 * 1024) // max(per_row, 1)))
    for ht in range(target, 0, -1):
        if H % ht == 0:
            return ht
    return 1


# ----------------------------------------------------------------------------
# Pallas kernel: one output row-strip per grid step, 9-tap unrolled MAC,
# halo handled by a zero-padded VMEM scratch built once per (batch, C-tile).
# ----------------------------------------------------------------------------
def _dwconv_kernel(x_ref, w_ref, o_ref, xpad_ref, *, ksize, pad):
    # x_ref:    (1, H, W, CT)       full-height input block (resident over h)
    # w_ref:    (K*K, CT)           tap-major depthwise weights
    # o_ref:    (1, HT, W, CT)      output row strip
    # xpad_ref: (H+2*pad, Wpad, CT) zero-padded VMEM copy of the image
    h_idx = pl.program_id(2)
    _, H, W, CT = x_ref.shape
    _, HT, _, _ = o_ref.shape
    Wpad = xpad_ref.shape[1]

    # Build the zero-padded scratch once per (batch, channel-tile):
    # rows [pad, pad+H) x cols [0, W) hold the image, everything else is 0.
    @pl.when(h_idx == 0)
    def _():
        xpad_ref[...] = jnp.zeros(xpad_ref.shape, xpad_ref.dtype)
        xpad_ref[pad:pad + H, 0:W, :] = x_ref[0]

    # Hoisted weight load/upcast: (K*K, CT) f32, one broadcast per tap below.
    w = w_ref[...].astype(jnp.float32)

    r0 = h_idx * HT                       # first output row of this strip
    acc = None
    for kh in range(ksize):               # statically unrolled 3x3 taps
        # Scratch rows [r0+kh, r0+kh+HT); row axis is untiled -> alignment-free.
        band = xpad_ref[pl.ds(r0 + kh, HT), :, :]          # (HT, Wpad, CT)
        for kw in range(ksize):
            s = kw - pad                  # column shift in {-1, 0, +1}
            if s == 0:
                shifted = band
            else:
                # XLU roll (jnp.roll semantics): out col j reads band col j+s.
                # Valid because scratch cols >= W are zero and Wpad >= W + pad:
                # the kept region [0, W) never reads wrapped image data, and
                # out-of-image neighbours read zeros (needs pad <= K-1, true).
                shifted = pltpu.roll(band, (-s) % Wpad, axis=1)
            term = shifted[:, 0:W, :] * w[kh * ksize + kw].reshape(1, 1, CT)
            acc = term if acc is None else acc + term      # f32 accumulate
    o_ref[0] = acc.astype(o_ref.dtype)    # lane-dense, full-width strip store


# ----------------------------------------------------------------------------
# NHWC entry point (no transposes, no pad): the preferred path.
# ----------------------------------------------------------------------------
def depthwise_conv2d_nhwc(x_nhwc, weight, *, stride=1, padding=1):
    """Depthwise 'same' conv on an NHWC tensor.  weight: (C, 1, K, K)."""
    B, H, W, C = x_nhwc.shape
    Cw, one, K, K2 = weight.shape
    assert Cw == C and one == 1 and K == K2
    assert stride == 1, "stride != 1 not implemented"        # TODO(synk)
    assert 2 * padding == K - 1, "'same' padding only"       # TODO(synk)

    # Channel (lane) tiling: 128-lane tiles when possible, else one full-C
    # block (masked lanes but no extra HBM traffic; callers wanting fully
    # lane-dense stores for C % 128 != 0 can pre-pad channels to 128k).
    CT = 128 if C % 128 == 0 else C
    n_ct = C // CT

    Hpad = H + 2 * padding
    Wpad = _round_up(W + 2 * padding, 8)
    itemsize = jnp.dtype(x_nhwc.dtype).itemsize
    HT = _pick_row_tile(H, W, Wpad, CT, itemsize)
    n_hs = H // HT

    # weight (C, 1, K, K) -> (K*K, C): tap-major, channels on lanes (tiny).
    w_taps = jnp.transpose(weight.reshape(C, K * K), (1, 0))

    # VMEM budget: double-buffered input/output blocks + scratch + weights.
    in_block = H * W * CT * itemsize
    out_block = HT * W * CT * itemsize
    scratch = Hpad * Wpad * CT * itemsize
    w_bytes = K * K * C * jnp.dtype(weight.dtype).itemsize
    need = 2 * in_block + 2 * out_block + scratch + 2 * w_bytes
    vmem_limit = int(min(max(1.5 * need + (2 << 20), 32 << 20), 64 << 20))

    kern = functools.partial(_dwconv_kernel, ksize=K, pad=padding)
    return pl.pallas_call(
        kern,
        out_shape=jax.ShapeDtypeStruct((B, H, W, C), x_nhwc.dtype),
        grid=(B, n_ct, n_hs),
        in_specs=[
            # Full-height image block; index_map ignores the strip axis so the
            # block is DMA'd once and stays resident across all strips of (b,c).
            pl.BlockSpec((1, H, W, CT), lambda b, c, h: (b, 0, 0, c)),
            # Tap-major weights, resident across the whole grid.
            pl.BlockSpec((K * K, CT), lambda b, c, h: (0, c)),
        ],
        out_specs=pl.BlockSpec((1, HT, W, CT), lambda b, c, h: (b, h, 0, c)),
        scratch_shapes=[pltpu.VMEM((Hpad, Wpad, CT), x_nhwc.dtype)],
        compiler_params=pltpu.CompilerParams(
            dimension_semantics=("parallel", "parallel", "arbitrary"),
            vmem_limit_bytes=vmem_limit),
    )(x_nhwc, w_taps)


# ----------------------------------------------------------------------------
# PyTorch-shaped wrapper (NCHW in / NCHW out), matching the nn.Module.
# ----------------------------------------------------------------------------
def depthwise_conv2d(x_nchw, weight, *, stride=1, padding=1):
    """Depthwise conv2d, groups == in_channels, bias=False (module default)."""
    # Single NCHW -> NHWC layout change so C lands on the 128-lane axis.
    x_nhwc = jnp.transpose(x_nchw, (0, 2, 3, 1))
    out_nhwc = depthwise_conv2d_nhwc(x_nhwc, weight, stride=stride, padding=padding)
    return jnp.transpose(out_nhwc, (0, 3, 1, 2))


# ----------------------------------------------------------------------------
# Pure-JAX reference (for correctness check).
# ----------------------------------------------------------------------------
def depthwise_conv2d_ref(x_nchw, weight, *, stride=1, padding=1):
    C = x_nchw.shape[1]
    return jax.lax.conv_general_dilated(
        x_nchw, weight,
        window_strides=(stride, stride),
        padding=((padding, padding), (padding, padding)),
        dimension_numbers=("NCHW", "OIHW", "NCHW"),
        feature_group_count=C)


# ----------------------------------------------------------------------------
if __name__ == "__main__":
    B, C, H, W = 2, 128, 16, 16     # C=128 fills the lane dimension
    K = 3

    key = jax.random.PRNGKey(0)
    kx, kw = jax.random.split(key)
    x = jax.random.normal(kx, (B, C, H, W), jnp.float32)
    weight = jax.random.normal(kw, (C, 1, K, K), jnp.float32) * 0.1

    # f32 path.
    out = jax.block_until_ready(depthwise_conv2d(x, weight))
    ref = depthwise_conv2d_ref(x, weight)
    assert out.shape == (B, C, H, W)
    assert jnp.allclose(out, ref, atol=1e-4, rtol=1e-4), "f32 mismatch vs reference"

    # bf16 inputs (half the HBM traffic), f32 accumulation inside the kernel.
    x16 = x.astype(jnp.bfloat16)
    w16 = weight.astype(jnp.bfloat16)
    out16 = jax.block_until_ready(depthwise_conv2d(x16, w16))
    ref16 = depthwise_conv2d_ref(x16.astype(jnp.float32), w16.astype(jnp.float32))
    assert out16.dtype == jnp.bfloat16
    assert jnp.allclose(out16.astype(jnp.float32), ref16, atol=5e-2, rtol=5e-2), \
        "bf16 mismatch vs reference"

    # Channel count that is not a multiple of 128 (full-C lane-block fallback).
    x2 = jax.random.normal(kx, (1, 64, 16, 16), jnp.float32)
    w2 = jax.random.normal(kw, (64, 1, K, K), jnp.float32) * 0.1
    out2 = jax.block_until_ready(depthwise_conv2d(x2, w2))
    ref2 = depthwise_conv2d_ref(x2, w2)
    assert jnp.allclose(out2, ref2, atol=1e-4, rtol=1e-4), "C=64 mismatch vs reference"

    print("KERNEL_OK")
</pallas_src>

<mosaic_0001>
module attributes {stable_mosaic.version = 11 : i64} {
  func.func @_dwconv_kernel(%arg0: i32, %arg1: i32, %arg2: i32, %arg3: memref<1x16x16x128xf32, #tpu.memory_space<vmem>>, %arg4: memref<9x128xf32, #tpu.memory_space<vmem>>, %arg5: memref<1x4x16x128xf32, #tpu.memory_space<vmem>>, %arg6: memref<18x24x128xf32, #tpu.memory_space<vmem>>) attributes {dimension_semantics = [#tpu.dimension_semantics<parallel>, #tpu.dimension_semantics<parallel>, #tpu.dimension_semantics<arbitrary>], iteration_bounds = array<i64: 2, 1, 4>, scalar_prefetch = 0 : i64, scratch_operands = 1 : i64, tpu.core_type = #tpu.core_type<tc>, window_params = [{transform_indices = @transform_0, window_bounds = array<i64: 1, 16, 16, 128>}, {transform_indices = @transform_1, window_bounds = array<i64: 9, 128>}, {transform_indices = @transform_2, window_bounds = array<i64: 1, 4, 16, 128>}]} {
    %c0_i32 = arith.constant 0 : i32
    %0 = arith.cmpi eq, %arg2, %c0_i32 : i32
    %1 = arith.extui %0 : i1 to i32
    %c0_i32_0 = arith.constant 0 : i32
    %2 = arith.cmpi ne, %1, %c0_i32_0 : i32
    scf.if %2 {
      %cst = arith.constant 0.000000e+00 : f32
      %85 = vector.broadcast %cst : f32 to vector<18x24x128xf32>
      %c0_18 = arith.constant 0 : index
      %c0_19 = arith.constant 0 : index
      %c0_20 = arith.constant 0 : index
      %86 = vector.load %arg6[%c0_18, %c0_19, %c0_20] : memref<18x24x128xf32, #tpu.memory_space<vmem>>, vector<18x24x128xf32>
      tpu.vector_store %arg6[%c0_18, %c0_19, %c0_20], %85 {strides = array<i32>} : memref<18x24x128xf32, #tpu.memory_space<vmem>>, vector<18x24x128xf32>,
      %c0_21 = arith.constant 0 : index
      %c0_22 = arith.constant 0 : index
      %c0_23 = arith.constant 0 : index
      %c0_24 = arith.constant 0 : index
      %87 = vector.load %arg3[%c0_21, %c0_22, %c0_23, %c0_24] : memref<1x16x16x128xf32, #tpu.memory_space<vmem>>, vector<1x16x16x128xf32>
      %88 = vector.shape_cast %87 : vector<1x16x16x128xf32> to vector<16x16x128xf32>
      %c1 = arith.constant 1 : index
      %c0_25 = arith.constant 0 : index
      %c0_26 = arith.constant 0 : index
      %89 = vector.load %arg6[%c1, %c0_25, %c0_26] : memref<18x24x128xf32, #tpu.memory_space<vmem>>, vector<16x16x128xf32>
      tpu.vector_store %arg6[%c1, %c0_25, %c0_26], %88 {strides = array<i32>} : memref<18x24x128xf32, #tpu.memory_space<vmem>>, vector<16x16x128xf32>,
    } else {
    }
    %c0 = arith.constant 0 : index
    %c0_1 = arith.constant 0 : index
    %3 = vector.load %arg4[%c0, %c0_1] : memref<9x128xf32, #tpu.memory_space<vmem>>, vector<9x128xf32>
    %c4_i32 = arith.constant 4 : i32
    %4 = arith.muli %arg2, %c4_i32 : i32
    %c0_i32_2 = arith.constant 0 : i32
    %5 = arith.addi %4, %c0_i32_2 : i32
    %6 = arith.index_cast %5 : i32 to index
    %c0_3 = arith.constant 0 : index
    %c0_4 = arith.constant 0 : index
    %7 = vector.load %arg6[%6, %c0_3, %c0_4] : memref<18x24x128xf32, #tpu.memory_space<vmem>>, vector<4x24x128xf32>
    %c1_i32 = arith.constant 1 : i32
    %8 = tpu.dynamic_rotate %7 by %c1_i32 dim 1 : vector<4x24x128xf32>, i32 -> vector<4x24x128xf32>
    %9 = vector.extract_strided_slice %8 {offsets = [0, 0, 0], sizes = [4, 16, 128], strides = [1, 1, 1]} : vector<4x24x128xf32> to vector<4x16x128xf32>
    %10 = vector.extract_strided_slice %3 {offsets = [0, 0], sizes = [1, 128], strides = [1, 1]} : vector<9x128xf32> to vector<1x128xf32>
    %11 = vector.shape_cast %10 : vector<1x128xf32> to vector<128xf32>
    %12 = vector.shape_cast %11 : vector<128xf32> to vector<1x1x128xf32>
    %13 = vector.broadcast %12 : vector<1x1x128xf32> to vector<4x16x128xf32>
    %14 = arith.mulf %9, %13 : vector<4x16x128xf32>
    %15 = vector.extract_strided_slice %7 {offsets = [0, 0, 0], sizes = [4, 16, 128], strides = [1, 1, 1]} : vector<4x24x128xf32> to vector<4x16x128xf32>
    %16 = vector.extract_strided_slice %3 {offsets = [1, 0], sizes = [1, 128], strides = [1, 1]} : vector<9x128xf32> to vector<1x128xf32>
    %17 = vector.shape_cast %16 : vector<1x128xf32> to vector<128xf32>
    %18 = vector.shape_cast %17 : vector<128xf32> to vector<1x1x128xf32>
    %19 = vector.broadcast %18 : vector<1x1x128xf32> to vector<4x16x128xf32>
    %20 = arith.mulf %15, %19 : vector<4x16x128xf32>
    %21 = arith.addf %14, %20 : vector<4x16x128xf32>
    %c23_i32 = arith.constant 23 : i32
    %22 = tpu.dynamic_rotate %7 by %c23_i32 dim 1 : vector<4x24x128xf32>, i32 -> vector<4x24x128xf32>
    %23 = vector.extract_strided_slice %22 {offsets = [0, 0, 0], sizes = [4, 16, 128], strides = [1, 1, 1]} : vector<4x24x128xf32> to vector<4x16x128xf32>
    %24 = vector.extract_strided_slice %3 {offsets = [2, 0], sizes = [1, 128], strides = [1, 1]} : vector<9x128xf32> to vector<1x128xf32>
    %25 = vector.shape_cast %24 : vector<1x128xf32> to vector<128xf32>
    %26 = vector.shape_cast %25 : vector<128xf32> to vector<1x1x128xf32>
    %27 = vector.broadcast %26 : vector<1x1x128xf32> to vector<4x16x128xf32>
    %28 = arith.mulf %23, %27 : vector<4x16x128xf32>
    %29 = arith.addf %21, %28 : vector<4x16x128xf32>
    %c1_i32_5 = arith.constant 1 : i32
    %30 = arith.addi %4, %c1_i32_5 : i32
    %31 = arith.index_cast %30 : i32 to index
    %c0_6 = arith.constant 0 : index
    %c0_7 = arith.constant 0 : index
    %32 = vector.load %arg6[%31, %c0_6, %c0_7] : memref<18x24x128xf32, #tpu.memory_space<vmem>>, vector<4x24x128xf32>
    %c1_i32_8 = arith.constant 1 : i32
    %33 = tpu.dynamic_rotate %32 by %c1_i32_8 dim 1 : vector<4x24x128xf32>, i32 -> vector<4x24x128xf32>
    %34 = vector.extract_strided_slice %33 {offsets = [0, 0, 0], sizes = [4, 16, 128], strides = [1, 1, 1]} : vector<4x24x128xf32> to vector<4x16x128xf32>
    %35 = vector.extract_strided_slice %3 {offsets = [3, 0], sizes = [1, 128], strides = [1, 1]} : vector<9x128xf32> to vector<1x128xf32>
    %36 = vector.shape_cast %35 : vector<1x128xf32> to vector<128xf32>
    %37 = vector.shape_cast %36 : vector<128xf32> to vector<1x1x128xf32>
    %38 = vector.broadcast %37 : vector<1x1x128xf32> to vector<4x16x128xf32>
    %39 = arith.mulf %34, %38 : vector<4x16x128xf32>
    %40 = arith.addf %29, %39 : vector<4x16x128xf32>
    %41 = vector.extract_strided_slice %32 {offsets = [0, 0, 0], sizes = [4, 16, 128], strides = [1, 1, 1]} : vector<4x24x128xf32> to vector<4x16x128xf32>
    %42 = vector.extract_strided_slice %3 {offsets = [4, 0], sizes = [1, 128], strides = [1, 1]} : vector<9x128xf32> to vector<1x128xf32>
    %43 = vector.shape_cast %42 : vector<1x128xf32> to vector<128xf32>
    %44 = vector.shape_cast %43 : vector<128xf32> to vector<1x1x128xf32>
    %45 = vector.broadcast %44 : vector<1x1x128xf32> to vector<4x16x128xf32>
    %46 = arith.mulf %41, %45 : vector<4x16x128xf32>
    %47 = arith.addf %40, %46 : vector<4x16x128xf32>
    %c23_i32_9 = arith.constant 23 : i32
    %48 = tpu.dynamic_rotate %32 by %c23_i32_9 dim 1 : vector<4x24x128xf32>, i32 -> vector<4x24x128xf32>
    %49 = vector.extract_strided_slice %48 {offsets = [0, 0, 0], sizes = [4, 16, 128], strides = [1, 1, 1]} : vector<4x24x128xf32> to vector<4x16x128xf32>
    %50 = vector.extract_strided_slice %3 {offsets = [5, 0], sizes = [1, 128], strides = [1, 1]} : vector<9x128xf32> to vector<1x128xf32>
    %51 = vector.shape_cast %50 : vector<1x128xf32> to vector<128xf32>
    %52 = vector.shape_cast %51 : vector<128xf32> to vector<1x1x128xf32>
    %53 = vector.broadcast %52 : vector<1x1x128xf32> to vector<4x16x128xf32>
    %54 = arith.mulf %49, %53 : vector<4x16x128xf32>
    %55 = arith.addf %47, %54 : vector<4x16x128xf32>
    %c2_i32 = arith.constant 2 : i32
    %56 = arith.addi %4, %c2_i32 : i32
    %57 = arith.index_cast %56 : i32 to index
    %c0_10 = arith.constant 0 : index
    %c0_11 = arith.constant 0 : index
    %58 = vector.load %arg6[%57, %c0_10, %c0_11] : memref<18x24x128xf32, #tpu.memory_space<vmem>>, vector<4x24x128xf32>
    %c1_i32_12 = arith.constant 1 : i32
    %59 = tpu.dynamic_rotate %58 by %c1_i32_12 dim 1 : vector<4x24x128xf32>, i32 -> vector<4x24x128xf32>
    %60 = vector.extract_strided_slice %59 {offsets = [0, 0, 0], sizes = [4, 16, 128], strides = [1, 1, 1]} : vector<4x24x128xf32> to vector<4x16x128xf32>
    %61 = vector.extract_strided_slice %3 {offsets = [6, 0], sizes = [1, 128], strides = [1, 1]} : vector<9x128xf32> to vector<1x128xf32>
    %62 = vector.shape_cast %61 : vector<1x128xf32> to vector<128xf32>
    %63 = vector.shape_cast %62 : vector<128xf32> to vector<1x1x128xf32>
    %64 = vector.broadcast %63 : vector<1x1x128xf32> to vector<4x16x128xf32>
    %65 = arith.mulf %60, %64 : vector<4x16x128xf32>
    %66 = arith.addf %55, %65 : vector<4x16x128xf32>
    %67 = vector.extract_strided_slice %58 {offsets = [0, 0, 0], sizes = [4, 16, 128], strides = [1, 1, 1]} : vector<4x24x128xf32> to vector<4x16x128xf32>
    %68 = vector.extract_strided_slice %3 {offsets = [7, 0], sizes = [1, 128], strides = [1, 1]} : vector<9x128xf32> to vector<1x128xf32>
    %69 = vector.shape_cast %68 : vector<1x128xf32> to vector<128xf32>
    %70 = vector.shape_cast %69 : vector<128xf32> to vector<1x1x128xf32>
    %71 = vector.broadcast %70 : vector<1x1x128xf32> to vector<4x16x128xf32>
    %72 = arith.mulf %67, %71 : vector<4x16x128xf32>
    %73 = arith.addf %66, %72 : vector<4x16x128xf32>
    %c23_i32_13 = arith.constant 23 : i32
    %74 = tpu.dynamic_rotate %58 by %c23_i32_13 dim 1 : vector<4x24x128xf32>, i32 -> vector<4x24x128xf32>
    %75 = vector.extract_strided_slice %74 {offsets = [0, 0, 0], sizes = [4, 16, 128], strides = [1, 1, 1]} : vector<4x24x128xf32> to vector<4x16x128xf32>
    %76 = vector.extract_strided_slice %3 {offsets = [8, 0], sizes = [1, 128], strides = [1, 1]} : vector<9x128xf32> to vector<1x128xf32>
    %77 = vector.shape_cast %76 : vector<1x128xf32> to vector<128xf32>
    %78 = vector.shape_cast %77 : vector<128xf32> to vector<1x1x128xf32>
    %79 = vector.broadcast %78 : vector<1x1x128xf32> to vector<4x16x128xf32>
    %80 = arith.mulf %75, %79 : vector<4x16x128xf32>
    %81 = arith.addf %73, %80 : vector<4x16x128xf32>
    %c0_14 = arith.constant 0 : index
    %c0_15 = arith.constant 0 : index
    %c0_16 = arith.constant 0 : index
    %c0_17 = arith.constant 0 : index
    %82 = vector.load %arg5[%c0_14, %c0_15, %c0_16, %c0_17] : memref<1x4x16x128xf32, #tpu.memory_space<vmem>>, vector<1x4x16x128xf32>
    %83 = vector.shape_cast %82 : vector<1x4x16x128xf32> to vector<4x16x128xf32>
    %84 = vector.shape_cast %81 : vector<4x16x128xf32> to vector<1x4x16x128xf32>
    tpu.vector_store %arg5[%c0_14, %c0_15, %c0_16, %c0_17], %84 {strides = array<i32>} : memref<1x4x16x128xf32, #tpu.memory_space<vmem>>, vector<1x4x16x128xf32>,
    return
  }
  func.func @transform_0(%arg0: i32, %arg1: i32, %arg2: i32) -> (i32, i32, i32, i32) {
    %c0_i32 = arith.constant 0 : i32
    %c0_i32_0 = arith.constant 0 : i32
    %c0_i32_1 = arith.constant 0 : i32
    return %arg0, %c0_i32, %c0_i32_0, %arg1 : i32, i32, i32, i32
  }
  func.func @transform_1(%arg0: i32, %arg1: i32, %arg2: i32) -> (i32, i32) {
    %c0_i32 = arith.constant 0 : i32
    %c0_i32_0 = arith.constant 0 : i32
    return %c0_i32, %arg1 : i32, i32
  }
  func.func @transform_2(%arg0: i32, %arg1: i32, %arg2: i32) -> (i32, i32, i32, i32) {
    %c0_i32 = arith.constant 0 : i32
    %c0_i32_0 = arith.constant 0 : i32
    return %arg0, %arg2, %c0_i32, %arg1 : i32, i32, i32, i32
  }
}

</mosaic_0001>

<llo_original>
// kernel: tpu_custom_call.1
$region0: #{tpu_custom_call.1}
  #allocation0 [shape = 'u32[]', space=smem, size = 0x4, offset = 0x4, fixed_abs, tag = 'smem constant byte address 0x4 - core index']
  #allocation1 [shape = 'u32[144,128]{1,0:T(1,128)}', space=vmem, size = 0x12000, scoped, tag = 'internal scratch']
  #allocation2 [shape = 'f32[18,24,128]{2,1,0:T(8,128)}', space=vmem, size = 0x36000, scoped, tag = 'scratch operand']
  %s0 = inlined_call_operand.hbm [shape: f32[2,16,16,128], index: 0, kind: input, shape index: {}]
  %s1 = inlined_call_operand.hbm [shape: f32[9,128], index: 1, kind: input, shape index: {}]
  %s2 = inlined_call_operand.hbm [shape: f32[2,16,16,128], index: 2, kind: output, shape index: {}]
  %s3 = sld [smem:[#allocation0]]
  $region53: #{tpu_custom_call.1} parent=0
    _
  %s5 = ssub.s32 1, %s3
  %s6 = scalar_select 0, %s5, %s3
  $region1: #{tpu_custom_call.1} parent=0
    #allocation3 [shape = 'u8[262144]{0}', space=vmem, size = 0x40000, scoped, tag = 'input window, operand 0']
    #allocation4 [shape = 's32[2]{0}', space=sflag, size = 0x8, scoped, tag = 'scoped memory for tpu_custom_call.1']
    #allocation5 [shape = 's32[2]{0}', space=sflag, size = 0x8, scoped, tag = 'scoped memory for tpu_custom_call.1']
    #allocation6 [shape = 'u8[8192]{0}', space=vmem, size = 0x2000, scoped, tag = 'input window, operand 1, single buffered']
    #allocation7 [shape = 's32[1]{0}', space=sflag, size = 0x4, scoped, tag = 'scoped memory for tpu_custom_call.1']
    #allocation8 [shape = 'u8[65536]{0}', space=vmem, size = 0x10000, scoped, tag = 'output window, operand 0']
    %7 = vsyncpa [#allocation4], 0
    %s8 = scalar_lea.sflag [#allocation4], 1
    %9 = vsyncpa %s8, 0
    %10 = vsyncpa [#allocation7], 0
    %11 = vsyncpa [#allocation5], 0
    %s12 = scalar_lea.sflag [#allocation5], 1
    %13 = vsyncpa %s12, 0
    loop: start=0, step=1, limit=10
    $region2: #{tpu_custom_call.1} parent=1 // loop_pre_header
      _
    $region3: #{tpu_custom_call.1} parent=1 // loop_header
      %s15 = sphi 0, %s19
      %p16 = scmp.ge.s32.totalorder %s15, 10
      %s22 = sphi 0, %s41
      %s23 = sphi 0, %s37
      %s24 = sphi 0, %s33
      %s25 = sphi 0, %s22
      %s26 = sphi 0, %s23
      %s27 = sphi 0, %s24
      %s28 = sphi 0, %s25
      %s29 = sphi 0, %s26
      %s30 = sphi 0, %s27
      %s46 = sphi 0, %s48
      %s49 = sphi 0, %s46
      %s50 = sphi 0, %s49
      %s66 = sphi 0, %s50
      %s72 = sphi 0, %s74
      %s75 = sphi 0, %s72
      %s76 = sphi 0, %s75
      %s92 = sphi 0, %s76
      %s102 = sphi 0, %s104
      %s105 = sphi 0, %s102
      %s106 = sphi 0, %s105
      %s122 = sphi 0, %s106
    $region4: #{tpu_custom_call.1} parent=1 // loop_header_branch
      %18 = sbr.rel (%p16) target = $region8
    $region5: #{tpu_custom_call.1} parent=1 // loop_body
      %s20 = ssub.s32 %s15, 1
      %s21 = ssub.s32 %s15, 2
      %s31 = sadd.s32 1, %s24
      %p32 = scmp.ge.s32.totalorder %s31, 4
      %s33 = scalar_select %p32, 0, %s31
      %s34 = sadd.s32 1, %s23
      %s35 = scalar_select %p32, %s34, %s23
      %p36 = scmp.ge.s32.totalorder %s35, 1
      %s37 = scalar_select %p36, 0, %s35
      %s38 = sadd.s32 1, %s22
      %s39 = scalar_select %p36, %s38, %s22
      %p40 = scmp.ge.s32.totalorder %s39, 2
      %s41 = scalar_select %p40, 0, %s39
      %s42 = ssub.s32 %s22, %s41
      %s43 = ssub.s32 %s23, %s37
      %s44 = sor.u32 %s42, %s43
      %p45 = scmp.eq.s32.totalorder %s44, 0
      %s47 = sadd.s32 %s46, 1
      %s48 = scalar_select %p45, %s46, %s47
      %p51 = pneg %p45
      %p52 = scmp.eq.s32.totalorder %s15, 7
      %p53 = por %p51, %p52
      %p54 = scmp.ne.s32.totalorder %s46, %s49
      %p55 = scmp.eq.s32.totalorder %s15, 0
      %p56 = por %p54, %p55
      %p57 = scmp.ne.s32.totalorder %s46, %s49
      %p58 = scmp.eq.s32.totalorder %s20, 7
      %p59 = por %p57, %p58
      %p60 = scmp.ne.s32.totalorder %s49, %s50
      %p61 = scmp.eq.s32.totalorder %s20, 0
      %p62 = por %p60, %p61
      %p63 = scmp.ne.s32.totalorder %s49, %s50
      %p64 = scmp.eq.s32.totalorder %s21, 7
      %p65 = por %p63, %p64
      %p67 = scmp.ne.s32.totalorder %s50, %s66
      %p68 = scmp.eq.s32.totalorder %s21, 0
      %p69 = por %p67, %p68
      %s70 = ssub.s32 %s23, %s37
      %p71 = scmp.eq.s32.totalorder %s70, 0
      %s73 = sadd.s32 %s72, 1
      %s74 = scalar_select %p71, %s72, %s73
      %p77 = pneg %p71
      %p78 = scmp.eq.s32.totalorder %s15, 7
      %p79 = por %p77, %p78
      %p80 = scmp.ne.s32.totalorder %s72, %s75
      %p81 = scmp.eq.s32.totalorder %s15, 0
      %p82 = por %p80, %p81
      %p83 = scmp.ne.s32.totalorder %s72, %s75
      %p84 = scmp.eq.s32.totalorder %s20, 7
      %p85 = por %p83, %p84
      %p86 = scmp.ne.s32.totalorder %s75, %s76
      %p87 = scmp.eq.s32.totalorder %s20, 0
      %p88 = por %p86, %p87
      %p89 = scmp.ne.s32.totalorder %s75, %s76
      %p90 = scmp.eq.s32.totalorder %s21, 7
      %p91 = por %p89, %p90
      %p93 = scmp.ne.s32.totalorder %s76, %s92
      %p94 = scmp.eq.s32.totalorder %s21, 0
      %p95 = por %p93, %p94
      %s96 = ssub.s32 %s22, %s41
      %s97 = ssub.s32 %s24, %s33
      %s98 = sor.u32 %s96, %s97
      %s99 = ssub.s32 %s23, %s37
      %s100 = sor.u32 %s98, %s99
      %p101 = scmp.eq.s32.totalorder %s100, 0
      %s103 = sadd.s32 %s102, 1
      %s104 = scalar_select %p101, %s102, %s103
      %p107 = pneg %p101
      %p108 = scmp.eq.s32.totalorder %s15, 7
      %p109 = por %p107, %p108
      %p110 = scmp.ne.s32.totalorder %s102, %s105
      %p111 = scmp.eq.s32.totalorder %s15, 0
      %p112 = por %p110, %p111
      %p113 = scmp.ne.s32.totalorder %s102, %s105
      %p114 = scmp.eq.s32.totalorder %s20, 7
      %p115 = por %p113, %p114
      %p116 = scmp.ne.s32.totalorder %s105, %s106
      %p117 = scmp.eq.s32.totalorder %s20, 0
      %p118 = por %p116, %p117
      %p119 = scmp.ne.s32.totalorder %s105, %s106
      %p120 = scmp.eq.s32.totalorder %s21, 7
      %p121 = por %p119, %p120
      %p123 = scmp.ne.s32.totalorder %s106, %s122
      %p124 = scmp.eq.s32.totalorder %s21, 0
      %p125 = por %p123, %p124
      %p126 = scmp.le.s32.totalorder 1, %s15
      %p127 = scmp.lt.s32.totalorder %s15, 9
      %p128 = pnand %p126, %p127
      %p129 = pneg %p128
      // Predicated region
      $region9: #{tpu_custom_call.1} parent=5 // pred_check
        _
      $region10: #{tpu_custom_call.1} parent=5 // pred_check_branch
        %131 = sbr.rel (%p128) target = $region12
      $region11: #{tpu_custom_call.1} parent=5 // pred_region
        %s132 = ssub.s32 %s15, 1
        // Predicated region
        $region13: #{tpu_custom_call.1} parent=11 // pred_check
          %p133 = pneg %p88
        $region14: #{tpu_custom_call.1} parent=11 // pred_check_branch
          %135 = sbr.rel (%p133) target = $region16
        $region15: #{tpu_custom_call.1} parent=11 // pred_region
          %s137 = ssub.s32 256, 256
          %138 = vsyncadd [#allocation7], %s137
          %s139 = smul.addr %s26, 128
          %s140 = scalar_lea.hbm %s1, %s139
          %s141 = sshll.u32 [#allocation6], 4
          %s142 = int_to_ptr.vmem [resolvable:$true] %s141
          %147 = dma.hbm_to_vmem [thread:$0]  %s140, 256, %s142, [#allocation7], 128, 128, 8
        $region16: #{tpu_custom_call.1} parent=11 // pred_fallthru
          _
      $region12: #{tpu_custom_call.1} parent=5 // pred_fallthru
        _
      %p148 = scmp.lt.s32.totalorder %s15, 8
      // Predicated region
      $region17: #{tpu_custom_call.1} parent=5 // pred_check
        %p149 = pneg %p148
      $region18: #{tpu_custom_call.1} parent=5 // pred_check_branch
        %151 = sbr.rel (%p149) target = $region20
      $region19: #{tpu_custom_call.1} parent=5 // pred_region
        // Predicated region
        $region21: #{tpu_custom_call.1} parent=19 // pred_check
          %p152 = pneg %p56
        $region22: #{tpu_custom_call.1} parent=19 // pred_check_branch
          %154 = sbr.rel (%p152) target = $region24
        $region23: #{tpu_custom_call.1} parent=19 // pred_region
          %s155 = sand.u32 %s46, 1
          %s156 = scalar_lea.sflag [#allocation4], %s155
          %s157 = sand.u32 %s46, 1
          %s158 = smul.addr %s157, 256
          %s159 = scalar_lea.vmem [#allocation3], %s158
          %s161 = ssub.s32 4096, 4096
          %162 = vsyncadd %s156, %s161
          %s163 = smul.addr %s22, 32
          %s164 = sadd.s32 %s23, %s163
          %s165 = smul.addr %s164, 128
          %s166 = scalar_lea.hbm %s0, %s165
          %s167 = sshll.u32 %s159, 4
          %s168 = int_to_ptr.vmem [resolvable:$true] %s167
          %173 = dma.hbm_to_vmem [thread:$0]  %s166, 4096, %s168, %s156, 128, 128, 8
        $region24: #{tpu_custom_call.1} parent=19 // pred_fallthru
          _
      $region20: #{tpu_custom_call.1} parent=5 // pred_fallthru
        _
      %p174 = scmp.le.s32.totalorder 1, %s15
      %p175 = scmp.lt.s32.totalorder %s15, 9
      %p176 = pnand %p174, %p175
      %p177 = pneg %p176
      // Predicated region
      $region25: #{tpu_custom_call.1} parent=5 // pred_check
        _
      $region26: #{tpu_custom_call.1} parent=5 // pred_check_branch
        %179 = sbr.rel (%p176) target = $region28
      $region27: #{tpu_custom_call.1} parent=5 // pred_region
        %s180 = ssub.s32 %s15, 1
        %s181 = sand.u32 %s49, 1
        %s182 = scalar_lea.sflag [#allocation4], %s181
        %s183 = sand.u32 %s49, 1
        %s184 = smul.addr %s183, 256
        %s185 = scalar_lea.vmem [#allocation3], %s184
        // Predicated region
        $region29: #{tpu_custom_call.1} parent=27 // pred_check
          %p186 = pneg %p62
        $region30: #{tpu_custom_call.1} parent=27 // pred_check_branch
          %188 = sbr.rel (%p186) target = $region32
        $region31: #{tpu_custom_call.1} parent=27 // pred_region
          %189 = dma.done %s182, 4096
        $region32: #{tpu_custom_call.1} parent=27 // pred_fallthru
          _
        // Predicated region
        $region33: #{tpu_custom_call.1} parent=27 // pred_check
          %p190 = pneg %p88
        $region34: #{tpu_custom_call.1} parent=27 // pred_check_branch
          %192 = sbr.rel (%p190) target = $region36
        $region35: #{tpu_custom_call.1} parent=27 // pred_region
          %193 = dma.done [#allocation7], 256
        $region36: #{tpu_custom_call.1} parent=27 // pred_fallthru
          _
        %s194 = sand.u32 %s49, 1
        %s195 = scalar_lea.sflag [#allocation4], %s194
        %s196 = sand.u32 %s49, 1
        %s197 = smul.addr %s196, 256
        %s198 = scalar_lea.vmem [#allocation3], %s197
        %p199 = pneg %p62
        %p200 = pneg %p59
        %p201 = pneg %p88
        %p202 = pneg %p85
        %p203 = pneg %p118
        %p204 = pneg %p115
        %s205 = sand.u32 %s105, 1
        %s206 = scalar_lea.sflag [#allocation5], %s205
        %s207 = sand.u32 %s105, 1
        %s208 = smul.addr %s207, 64
        %s209 = scalar_lea.vmem [#allocation8], %s208
        %s210 = smul.u32 4, %s27
        %p211 = scmp.eq.s32.totalorder %s27, 0
        // Predicated region
        $region37: #{tpu_custom_call.1} parent=27 // pred_check
          %p212 = pneg %p211
        $region38: #{tpu_custom_call.1} parent=27 // pred_check_branch
          %214 = sbr.rel (%p212) target = $region40
        $region39: #{tpu_custom_call.1} parent=27 // pred_region
          %215 = vst [vmem:[#allocation2] sm:$0xff] 0.0
          %216 = vst [vmem:[#allocation2 + $0x8] sm:$0xff] 0.0
          %217 = vst [vmem:[#allocation2 + $0x10] sm:$0xff] 0.0
          %218 = vst [vmem:[#allocation2 + $0x18] sm:$0xff] 0.0
          %219 = vst [vmem:[#allocation2 + $0x20] sm:$0xff] 0.0
          %220 = vst [vmem:[#allocation2 + $0x28] sm:$0xff] 0.0
          %221 = vst [vmem:[#allocation2 + $0x30] sm:$0xff] 0.0
          %222 = vst [vmem:[#allocation2 + $0x38] sm:$0xff] 0.0
          %223 = vst [vmem:[#allocation2 + $0x40] sm:$0xff] 0.0
          %224 = vst [vmem:[#allocation2 + $0x48] sm:$0xff] 0.0
          %225 = vst [vmem:[#allocation2 + $0x50] sm:$0xff] 0.0
          %226 = vst [vmem:[#allocation2 + $0x58] sm:$0xff] 0.0
          %227 = vst [vmem:[#allocation2 + $0x60] sm:$0xff] 0.0
          %228 = vst [vmem:[#allocation2 + $0x68] sm:$0xff] 0.0
          %229 = vst [vmem:[#allocation2 + $0x70] sm:$0xff] 0.0
          %230 = vst [vmem:[#allocation2 + $0x78] sm:$0xff] 0.0
          %231 = vst [vmem:[#allocation2 + $0x80] sm:$0xff] 0.0
          %232 = vst [vmem:[#allocation2 + $0x88] sm:$0xff] 0.0
          %233 = vst [vmem:[#allocation2 + $0x90] sm:$0xff] 0.0
          %234 = vst [vmem:[#allocation2 + $0x98] sm:$0xff] 0.0
          %235 = vst [vmem:[#allocation2 + $0xa0] sm:$0xff] 0.0
          %236 = vst [vmem:[#allocation2 + $0xa8] sm:$0xff] 0.0
          %237 = vst [vmem:[#allocation2 + $0xb0] sm:$0xff] 0.0
          %238 = vst [vmem:[#allocation2 + $0xb8] sm:$0xff] 0.0
          %239 = vst [vmem:[#allocation2 + $0xc0] sm:$0xff] 0.0
          %240 = vst [vmem:[#allocation2 + $0xc8] sm:$0xff] 0.0
          %241 = vst [vmem:[#allocation2 + $0xd0] sm:$0xff] 0.0
          %242 = vst [vmem:[#allocation2 + $0xd8] sm:$0xff] 0.0
          %243 = vst [vmem:[#allocation2 + $0xe0] sm:$0xff] 0.0
          %244 = vst [vmem:[#allocation2 + $0xe8] sm:$0xff] 0.0
          %245 = vst [vmem:[#allocation2 + $0xf0] sm:$0xff] 0.0
          %246 = vst [vmem:[#allocation2 + $0xf8] sm:$0xff] 0.0
          %247 = vst [vmem:[#allocation2 + $0x100] sm:$0xff] 0.0
          %248 = vst [vmem:[#allocation2 + $0x108] sm:$0xff] 0.0
          %249 = vst [vmem:[#allocation2 + $0x110] sm:$0xff] 0.0
          %250 = vst [vmem:[#allocation2 + $0x118] sm:$0xff] 0.0
          %251 = vst [vmem:[#allocation2 + $0x120] sm:$0xff] 0.0
          %252 = vst [vmem:[#allocation2 + $0x128] sm:$0xff] 0.0
          %253 = vst [vmem:[#allocation2 + $0x130] sm:$0xff] 0.0
          %254 = vst [vmem:[#allocation2 + $0x138] sm:$0xff] 0.0
          %255 = vst [vmem:[#allocation2 + $0x140] sm:$0xff] 0.0
          %256 = vst [vmem:[#allocation2 + $0x148] sm:$0xff] 0.0
          %257 = vst [vmem:[#allocation2 + $0x150] sm:$0xff] 0.0
          %258 = vst [vmem:[#allocation2 + $0x158] sm:$0xff] 0.0
          %259 = vst [vmem:[#allocation2 + $0x160] sm:$0xff] 0.0
          %260 = vst [vmem:[#allocation2 + $0x168] sm:$0xff] 0.0
          %261 = vst [vmem:[#allocation2 + $0x170] sm:$0xff] 0.0
          %262 = vst [vmem:[#allocation2 + $0x178] sm:$0xff] 0.0
          %263 = vst [vmem:[#allocation2 + $0x180] sm:$0xff] 0.0
          %264 = vst [vmem:[#allocation2 + $0x188] sm:$0xff] 0.0
          %265 = vst [vmem:[#allocation2 + $0x190] sm:$0xff] 0.0
          %266 = vst [vmem:[#allocation2 + $0x198] sm:$0xff] 0.0
          %267 = vst [vmem:[#allocation2 + $0x1a0] sm:$0xff] 0.0
          %268 = vst [vmem:[#allocation2 + $0x1a8] sm:$0xff] 0.0
          %v269 = vld [vmem:[%s185] sm:$0xff]
          %v270 = vld [vmem:[%s185 + $0x8] sm:$0xff]
          %v271 = vld [vmem:[%s185 + $0x10] sm:$0xff]
          %v272 = vld [vmem:[%s185 + $0x18] sm:$0xff]
          %v273 = vld [vmem:[%s185 + $0x20] sm:$0xff]
          %v274 = vld [vmem:[%s185 + $0x28] sm:$0xff]
          %v275 = vld [vmem:[%s185 + $0x30] sm:$0xff]
          %v276 = vld [vmem:[%s185 + $0x38] sm:$0xff]
          %v277 = vld [vmem:[%s185 + $0x40] sm:$0xff]
          %v278 = vld [vmem:[%s185 + $0x48] sm:$0xff]
          %v279 = vld [vmem:[%s185 + $0x50] sm:$0xff]
          %v280 = vld [vmem:[%s185 + $0x58] sm:$0xff]
          %v281 = vld [vmem:[%s185 + $0x60] sm:$0xff]
          %v282 = vld [vmem:[%s185 + $0x68] sm:$0xff]
          %v283 = vld [vmem:[%s185 + $0x70] sm:$0xff]
          %v284 = vld [vmem:[%s185 + $0x78] sm:$0xff]
          %v285 = vld [vmem:[%s185 + $0x80] sm:$0xff]
          %v286 = vld [vmem:[%s185 + $0x88] sm:$0xff]
          %v287 = vld [vmem:[%s185 + $0x90] sm:$0xff]
          %v288 = vld [vmem:[%s185 + $0x98] sm:$0xff]
          %v289 = vld [vmem:[%s185 + $0xa0] sm:$0xff]
          %v290 = vld [vmem:[%s185 + $0xa8] sm:$0xff]
          %v291 = vld [vmem:[%s185 + $0xb0] sm:$0xff]
          %v292 = vld [vmem:[%s185 + $0xb8] sm:$0xff]
          %v293 = vld [vmem:[%s185 + $0xc0] sm:$0xff]
          %v294 = vld [vmem:[%s185 + $0xc8] sm:$0xff]
          %v295 = vld [vmem:[%s185 + $0xd0] sm:$0xff]
          %v296 = vld [vmem:[%s185 + $0xd8] sm:$0xff]
          %v297 = vld [vmem:[%s185 + $0xe0] sm:$0xff]
          %v298 = vld [vmem:[%s185 + $0xe8] sm:$0xff]
          %v299 = vld [vmem:[%s185 + $0xf0] sm:$0xff]
          %v300 = vld [vmem:[%s185 + $0xf8] sm:$0xff]
          %s301 = scalar_lea.vmem [#allocation2], 24
          %302 = vst [vmem:[%s301] sm:$0xff] %v269
          %303 = vst [vmem:[%s301 + $0x8] sm:$0xff] %v270
          %304 = vst [vmem:[%s301 + $0x18] sm:$0xff] %v271
          %305 = vst [vmem:[%s301 + $0x20] sm:$0xff] %v272
          %306 = vst [vmem:[%s301 + $0x30] sm:$0xff] %v273
          %307 = vst [vmem:[%s301 + $0x38] sm:$0xff] %v274
          %308 = vst [vmem:[%s301 + $0x48] sm:$0xff] %v275
          %309 = vst [vmem:[%s301 + $0x50] sm:$0xff] %v276
          %310 = vst [vmem:[%s301 + $0x60] sm:$0xff] %v277
          %311 = vst [vmem:[%s301 + $0x68] sm:$0xff] %v278
          %312 = vst [vmem:[%s301 + $0x78] sm:$0xff] %v279
          %313 = vst [vmem:[%s301 + $0x80] sm:$0xff] %v280
          %314 = vst [vmem:[%s301 + $0x90] sm:$0xff] %v281
          %315 = vst [vmem:[%s301 + $0x98] sm:$0xff] %v282
          %316 = vst [vmem:[%s301 + $0xa8] sm:$0xff] %v283
          %317 = vst [vmem:[%s301 + $0xb0] sm:$0xff] %v284
          %318 = vst [vmem:[%s301 + $0xc0] sm:$0xff] %v285
          %319 = vst [vmem:[%s301 + $0xc8] sm:$0xff] %v286
          %320 = vst [vmem:[%s301 + $0xd8] sm:$0xff] %v287
          %321 = vst [vmem:[%s301 + $0xe0] sm:$0xff] %v288
          %322 = vst [vmem:[%s301 + $0xf0] sm:$0xff] %v289
          %323 = vst [vmem:[%s301 + $0xf8] sm:$0xff] %v290
          %324 = vst [vmem:[%s301 + $0x108] sm:$0xff] %v291
          %325 = vst [vmem:[%s301 + $0x110] sm:$0xff] %v292
          %326 = vst [vmem:[%s301 + $0x120] sm:$0xff] %v293
          %327 = vst [vmem:[%s301 + $0x128] sm:$0xff] %v294
          %328 = vst [vmem:[%s301 + $0x138] sm:$0xff] %v295
          %329 = vst [vmem:[%s301 + $0x140] sm:$0xff] %v296
          %330 = vst [vmem:[%s301 + $0x150] sm:$0xff] %v297
          %331 = vst [vmem:[%s301 + $0x158] sm:$0xff] %v298
          %332 = vst [vmem:[%s301 + $0x168] sm:$0xff] %v299
          %333 = vst [vmem:[%s301 + $0x170] sm:$0xff] %v300
        $region40: #{tpu_custom_call.1} parent=27 // pred_fallthru
          _
        %v334 = vld [vmem:[#allocation6] sm:$0xff]
        %v335 = vld [vmem:[#allocation6 + $0x8] sm:$0x1]
        %s336 = smul.u32 %s27, 4
        %s337 = smul.u32 %s336, 24
        %s338 = scalar_lea.vmem [#allocation2], %s337
        %v339 = vld [vmem:[%s338] sm:$0xff]
        %v340 = vld [vmem:[%s338 + $0x8] sm:$0xff]
        %v341 = vld [vmem:[%s338 + $0x10] sm:$0xff]
        %v342 = vld [vmem:[%s338 + $0x18] sm:$0xff]
        %v343 = vld [vmem:[%s338 + $0x20] sm:$0xff]
        %v344 = vld [vmem:[%s338 + $0x28] sm:$0xff]
        %v345 = vld [vmem:[%s338 + $0x30] sm:$0xff]
        %v346 = vld [vmem:[%s338 + $0x38] sm:$0xff]
        %v347 = vld [vmem:[%s338 + $0x40] sm:$0xff]
        %v348 = vld [vmem:[%s338 + $0x48] sm:$0xff]
        %v349 = vld [vmem:[%s338 + $0x50] sm:$0xff]
        %v350 = vld [vmem:[%s338 + $0x58] sm:$0xff]
        %v351 = vrot.slane %v339, 7
        %v352 = vrot.slane %v342, 7
        %v353 = vrot.slane %v345, 7
        %v354 = vrot.slane %v348, 7
        %v355 = vrot.slane %v340, 7
        %v356 = vrot.slane %v343, 7
        %v357 = vrot.slane %v346, 7
        %v358 = vrot.slane %v349, 7
        %v359 = vrot.slane %v341, 7
        %v360 = vrot.slane %v344, 7
        %v361 = vrot.slane %v347, 7
        %v362 = vrot.slane %v350, 7
        %v363 = vlaneseq
        %v364 = vshrl.u32 %v363, 7
        %vm365 = vcmp.lt.s32.totalorder %v364, 1
        %v366 = vsel %vm365, %v351, %v355
        %v367 = vsel %vm365, %v352, %v356
        %v368 = vsel %vm365, %v353, %v357
        %v369 = vsel %vm365, %v354, %v358
        %v370 = vsel %vm365, %v359, %v351
        %v371 = vsel %vm365, %v360, %v352
        %v372 = vsel %vm365, %v361, %v353
        %v373 = vsel %vm365, %v362, %v354
        %v374 = vlaneseq
        %v375 = vshrl.u32 %v374, 7
        %v376 = vsub.s32 0, %v375
        %v377 = vrot.slane %v334, %v376
        %v378 = vmul.f32 %v370, %v377
        %v379 = vmul.f32 %v366, %v377
        %v380 = vmul.f32 %v371, %v377
        %v381 = vmul.f32 %v367, %v377
        %v382 = vmul.f32 %v372, %v377
        %v383 = vmul.f32 %v368, %v377
        %v384 = vmul.f32 %v373, %v377
        %v385 = vmul.f32 %v369, %v377
        %v386 = vlaneseq
        %v387 = vshrl.u32 %v386, 7
        %v388 = vsub.s32 1, %v387
        %v389 = vrot.slane %v334, %v388
        %v390 = vmul.f32 %v339, %v389
        %v391 = vmul.f32 %v340, %v389
        %v392 = vmul.f32 %v342, %v389
        %v393 = vmul.f32 %v343, %v389
        %v394 = vmul.f32 %v345, %v389
        %v395 = vmul.f32 %v346, %v389
        %v396 = vmul.f32 %v348, %v389
        %v397 = vmul.f32 %v349, %v389
        %v398 = vadd.f32 %v378, %v390
        %v399 = vadd.f32 %v379, %v391
        %v400 = vadd.f32 %v380, %v392
        %v401 = vadd.f32 %v381, %v393
        %v402 = vadd.f32 %v382, %v394
        %v403 = vadd.f32 %v383, %v395
        %v404 = vadd.f32 %v384, %v396
        %v405 = vadd.f32 %v385, %v397
        %v406 = vrot.slane %v339, 1
        %v407 = vrot.slane %v342, 1
        %v408 = vrot.slane %v345, 1
        %v409 = vrot.slane %v348, 1
        %v410 = vrot.slane %v340, 1
        %v411 = vrot.slane %v343, 1
        %v412 = vrot.slane %v346, 1
        %v413 = vrot.slane %v349, 1
        %v414 = vrot.slane %v341, 1
        %v415 = vrot.slane %v344, 1
        %v416 = vrot.slane %v347, 1
        %v417 = vrot.slane %v350, 1
        %vm418 = vcmp.lt.s32.totalorder %v364, 7
        %v419 = vsel %vm418, %v410, %v414
        %v420 = vsel %vm418, %v411, %v415
        %v421 = vsel %vm418, %v412, %v416
        %v422 = vsel %vm418, %v413, %v417
        %v423 = vsel %vm418, %v406, %v410
        %v424 = vsel %vm418, %v407, %v411
        %v425 = vsel %vm418, %v408, %v412
        %v426 = vsel %vm418, %v409, %v413
        %v427 = vlaneseq
        %v428 = vshrl.u32 %v427, 7
        %v429 = vsub.s32 2, %v428
        %v430 = vrot.slane %v334, %v429
        %v431 = vmul.f32 %v423, %v430
        %v432 = vmul.f32 %v419, %v430
        %v433 = vmul.f32 %v424, %v430
        %v434 = vmul.f32 %v420, %v430
        %v435 = vmul.f32 %v425, %v430
        %v436 = vmul.f32 %v421, %v430
        %v437 = vmul.f32 %v426, %v430
        %v438 = vmul.f32 %v422, %v430
        %v439 = vadd.f32 %v398, %v431
        %v440 = vadd.f32 %v399, %v432
        %v441 = vadd.f32 %v400, %v433
        %v442 = vadd.f32 %v401, %v434
        %v443 = vadd.f32 %v402, %v435
        %v444 = vadd.f32 %v403, %v436
        %v445 = vadd.f32 %v404, %v437
        %v446 = vadd.f32 %v405, %v438
        %s447 = sadd.s32 %s336, 1
        %s448 = smul.u32 %s447, 24
        %s449 = scalar_lea.vmem [#allocation2], %s448
        %v450 = vld [vmem:[%s449] sm:$0xff]
        %v451 = vld [vmem:[%s449 + $0x8] sm:$0xff]
        %v452 = vld [vmem:[%s449 + $0x10] sm:$0xff]
        %v453 = vld [vmem:[%s449 + $0x18] sm:$0xff]
        %v454 = vld [vmem:[%s449 + $0x20] sm:$0xff]
        %v455 = vld [vmem:[%s449 + $0x28] sm:$0xff]
        %v456 = vld [vmem:[%s449 + $0x30] sm:$0xff]
        %v457 = vld [vmem:[%s449 + $0x38] sm:$0xff]
        %v458 = vld [vmem:[%s449 + $0x40] sm:$0xff]
        %v459 = vld [vmem:[%s449 + $0x48] sm:$0xff]
        %v460 = vld [vmem:[%s449 + $0x50] sm:$0xff]
        %v461 = vld [vmem:[%s449 + $0x58] sm:$0xff]
        %v462 = vrot.slane %v450, 7
        %v463 = vrot.slane %v453, 7
        %v464 = vrot.slane %v456, 7
        %v465 = vrot.slane %v459, 7
        %v466 = vrot.slane %v451, 7
        %v467 = vrot.slane %v454, 7
        %v468 = vrot.slane %v457, 7
        %v469 = vrot.slane %v460, 7
        %v470 = vrot.slane %v452, 7
        %v471 = vrot.slane %v455, 7
        %v472 = vrot.slane %v458, 7
        %v473 = vrot.slane %v461, 7
        %v474 = vsel %vm365, %v462, %v466
        %v475 = vsel %vm365, %v463, %v467
        %v476 = vsel %vm365, %v464, %v468
        %v477 = vsel %vm365, %v465, %v469
        %v478 = vsel %vm365, %v470, %v462
        %v479 = vsel %vm365, %v471, %v463
        %v480 = vsel %vm365, %v472, %v464
        %v481 = vsel %vm365, %v473, %v465
        %v482 = vlaneseq
        %v483 = vshrl.u32 %v482, 7
        %v484 = vsub.s32 3, %v483
        %v485 = vrot.slane %v334, %v484
        %v486 = vmul.f32 %v478, %v485
        %v487 = vmul.f32 %v474, %v485
        %v488 = vmul.f32 %v479, %v485
        %v489 = vmul.f32 %v475, %v485
        %v490 = vmul.f32 %v480, %v485
        %v491 = vmul.f32 %v476, %v485
        %v492 = vmul.f32 %v481, %v485
        %v493 = vmul.f32 %v477, %v485
        %v494 = vadd.f32 %v439, %v486
        %v495 = vadd.f32 %v440, %v487
        %v496 = vadd.f32 %v441, %v488
        %v497 = vadd.f32 %v442, %v489
        %v498 = vadd.f32 %v443, %v490
        %v499 = vadd.f32 %v444, %v491
        %v500 = vadd.f32 %v445, %v492
        %v501 = vadd.f32 %v446, %v493
        %v502 = vlaneseq
        %v503 = vshrl.u32 %v502, 7
        %v504 = vsub.s32 4, %v503
        %v505 = vrot.slane %v334, %v504
        %v506 = vmul.f32 %v450, %v505
        %v507 = vmul.f32 %v451, %v505
        %v508 = vmul.f32 %v453, %v505
        %v509 = vmul.f32 %v454, %v505
        %v510 = vmul.f32 %v456, %v505
        %v511 = vmul.f32 %v457, %v505
        %v512 = vmul.f32 %v459, %v505
        %v513 = vmul.f32 %v460, %v505
        %v514 = vadd.f32 %v494, %v506
        %v515 = vadd.f32 %v495, %v507
        %v516 = vadd.f32 %v496, %v508
        %v517 = vadd.f32 %v497, %v509
        %v518 = vadd.f32 %v498, %v510
        %v519 = vadd.f32 %v499, %v511
        %v520 = vadd.f32 %v500, %v512
        %v521 = vadd.f32 %v501, %v513
        %v522 = vrot.slane %v450, 1
        %v523 = vrot.slane %v453, 1
        %v524 = vrot.slane %v456, 1
        %v525 = vrot.slane %v459, 1
        %v526 = vrot.slane %v451, 1
        %v527 = vrot.slane %v454, 1
        %v528 = vrot.slane %v457, 1
        %v529 = vrot.slane %v460, 1
        %v530 = vrot.slane %v452, 1
        %v531 = vrot.slane %v455, 1
        %v532 = vrot.slane %v458, 1
        %v533 = vrot.slane %v461, 1
        %v534 = vsel %vm418, %v526, %v530
        %v535 = vsel %vm418, %v527, %v531
        %v536 = vsel %vm418, %v528, %v532
        %v537 = vsel %vm418, %v529, %v533
        %v538 = vsel %vm418, %v522, %v526
        %v539 = vsel %vm418, %v523, %v527
        %v540 = vsel %vm418, %v524, %v528
        %v541 = vsel %vm418, %v525, %v529
        %v542 = vlaneseq
        %v543 = vshrl.u32 %v542, 7
        %v544 = vsub.s32 5, %v543
        %v545 = vrot.slane %v334, %v544
        %v546 = vmul.f32 %v538, %v545
        %v547 = vmul.f32 %v534, %v545
        %v548 = vmul.f32 %v539, %v545
        %v549 = vmul.f32 %v535, %v545
        %v550 = vmul.f32 %v540, %v545
        %v551 = vmul.f32 %v536, %v545
        %v552 = vmul.f32 %v541, %v545
        %v553 = vmul.f32 %v537, %v545
        %v554 = vadd.f32 %v514, %v546
        %v555 = vadd.f32 %v515, %v547
        %v556 = vadd.f32 %v516, %v548
        %v557 = vadd.f32 %v517, %v549
        %v558 = vadd.f32 %v518, %v550
        %v559 = vadd.f32 %v519, %v551
        %v560 = vadd.f32 %v520, %v552
        %v561 = vadd.f32 %v521, %v553
        %s562 = sadd.s32 %s336, 2
        %s563 = smul.u32 %s562, 24
        %s564 = scalar_lea.vmem [#allocation2], %s563
        %v565 = vld [vmem:[%s564] sm:$0xff]
        %v566 = vld [vmem:[%s564 + $0x8] sm:$0xff]
        %v567 = vld [vmem:[%s564 + $0x10] sm:$0xff]
        %v568 = vld [vmem:[%s564 + $0x18] sm:$0xff]
        %v569 = vld [vmem:[%s564 + $0x20] sm:$0xff]
        %v570 = vld [vmem:[%s564 + $0x28] sm:$0xff]
        %v571 = vld [vmem:[%s564 + $0x30] sm:$0xff]
        %v572 = vld [vmem:[%s564 + $0x38] sm:$0xff]
        %v573 = vld [vmem:[%s564 + $0x40] sm:$0xff]
        %v574 = vld [vmem:[%s564 + $0x48] sm:$0xff]
        %v575 = vld [vmem:[%s564 + $0x50] sm:$0xff]
        %v576 = vld [vmem:[%s564 + $0x58] sm:$0xff]
        %v577 = vrot.slane %v565, 7
        %v578 = vrot.slane %v568, 7
        %v579 = vrot.slane %v571, 7
        %v580 = vrot.slane %v574, 7
        %v581 = vrot.slane %v566, 7
        %v582 = vrot.slane %v569, 7
        %v583 = vrot.slane %v572, 7
        %v584 = vrot.slane %v575, 7
        %v585 = vrot.slane %v567, 7
        %v586 = vrot.slane %v570, 7
        %v587 = vrot.slane %v573, 7
        %v588 = vrot.slane %v576, 7
        %v589 = vsel %vm365, %v577, %v581
        %v590 = vsel %vm365, %v578, %v582
        %v591 = vsel %vm365, %v579, %v583
        %v592 = vsel %vm365, %v580, %v584
        %v593 = vsel %vm365, %v585, %v577
        %v594 = vsel %vm365, %v586, %v578
        %v595 = vsel %vm365, %v587, %v579
        %v596 = vsel %vm365, %v588, %v580
        %v597 = vlaneseq
        %v598 = vshrl.u32 %v597, 7
        %v599 = vsub.s32 6, %v598
        %v600 = vrot.slane %v334, %v599
        %v601 = vmul.f32 %v593, %v600
        %v602 = vmul.f32 %v589, %v600
        %v603 = vmul.f32 %v594, %v600
        %v604 = vmul.f32 %v590, %v600
        %v605 = vmul.f32 %v595, %v600
        %v606 = vmul.f32 %v591, %v600
        %v607 = vmul.f32 %v596, %v600
        %v608 = vmul.f32 %v592, %v600
        %v609 = vadd.f32 %v554, %v601
        %v610 = vadd.f32 %v555, %v602
        %v611 = vadd.f32 %v556, %v603
        %v612 = vadd.f32 %v557, %v604
        %v613 = vadd.f32 %v558, %v605
        %v614 = vadd.f32 %v559, %v606
        %v615 = vadd.f32 %v560, %v607
        %v616 = vadd.f32 %v561, %v608
        %v617 = vlaneseq
        %v618 = vshrl.u32 %v617, 7
        %v619 = vsub.s32 7, %v618
        %v620 = vrot.slane %v334, %v619
        %v621 = vmul.f32 %v565, %v620
        %v622 = vmul.f32 %v566, %v620
        %v623 = vmul.f32 %v568, %v620
        %v624 = vmul.f32 %v569, %v620
        %v625 = vmul.f32 %v571, %v620
        %v626 = vmul.f32 %v572, %v620
        %v627 = vmul.f32 %v574, %v620
        %v628 = vmul.f32 %v575, %v620
        %v629 = vadd.f32 %v609, %v621
        %v630 = vadd.f32 %v610, %v622
        %v631 = vadd.f32 %v611, %v623
        %v632 = vadd.f32 %v612, %v624
        %v633 = vadd.f32 %v613, %v625
        %v634 = vadd.f32 %v614, %v626
        %v635 = vadd.f32 %v615, %v627
        %v636 = vadd.f32 %v616, %v628
        %v637 = vrot.slane %v565, 1
        %v638 = vrot.slane %v568, 1
        %v639 = vrot.slane %v571, 1
        %v640 = vrot.slane %v574, 1
        %v641 = vrot.slane %v566, 1
        %v642 = vrot.slane %v569, 1
        %v643 = vrot.slane %v572, 1
        %v644 = vrot.slane %v575, 1
        %v645 = vrot.slane %v567, 1
        %v646 = vrot.slane %v570, 1
        %v647 = vrot.slane %v573, 1
        %v648 = vrot.slane %v576, 1
        %v649 = vsel %vm418, %v641, %v645
        %v650 = vsel %vm418, %v642, %v646
        %v651 = vsel %vm418, %v643, %v647
        %v652 = vsel %vm418, %v644, %v648
        %v653 = vsel %vm418, %v637, %v641
        %v654 = vsel %vm418, %v638, %v642
        %v655 = vsel %vm418, %v639, %v643
        %v656 = vsel %vm418, %v640, %v644
        %v657 = vlaneseq
        %v658 = vshrl.u32 %v657, 7
        %v659 = vsub.s32 0, %v658
        %v660 = vrot.slane %v335, %v659
        %v661 = vmul.f32 %v653, %v660
        %v662 = vmul.f32 %v649, %v660
        %v663 = vmul.f32 %v654, %v660
        %v664 = vmul.f32 %v650, %v660
        %v665 = vmul.f32 %v655, %v660
        %v666 = vmul.f32 %v651, %v660
        %v667 = vmul.f32 %v656, %v660
        %v668 = vmul.f32 %v652, %v660
        %v669 = vadd.f32 %v629, %v661
        %v670 = vadd.f32 %v630, %v662
        %v671 = vadd.f32 %v631, %v663
        %v672 = vadd.f32 %v632, %v664
        %v673 = vadd.f32 %v633, %v665
        %v674 = vadd.f32 %v634, %v666
        %v675 = vadd.f32 %v635, %v667
        %v676 = vadd.f32 %v636, %v668
        %677 = vst [vmem:[%s209] sm:$0xff] %v669
        %678 = vst [vmem:[%s209 + $0x8] sm:$0xff] %v670
        %679 = vst [vmem:[%s209 + $0x10] sm:$0xff] %v671
        %680 = vst [vmem:[%s209 + $0x18] sm:$0xff] %v672
        %681 = vst [vmem:[%s209 + $0x20] sm:$0xff] %v673
        %682 = vst [vmem:[%s209 + $0x28] sm:$0xff] %v674
        %683 = vst [vmem:[%s209 + $0x30] sm:$0xff] %v675
        %684 = vst [vmem:[%s209 + $0x38] sm:$0xff] %v676
        %s685 = sand.u32 %s105, 1
        %s686 = scalar_lea.sflag [#allocation5], %s685
        %s687 = sand.u32 %s105, 1
        %s688 = smul.addr %s687, 64
        %s689 = scalar_lea.vmem [#allocation8], %s688
        // Predicated region
        $region41: #{tpu_custom_call.1} parent=27 // pred_check
          %p690 = pneg %p115
        $region42: #{tpu_custom_call.1} parent=27 // pred_check_branch
          %692 = sbr.rel (%p690) target = $region44
        $region43: #{tpu_custom_call.1} parent=27 // pred_region
          %s693 = smul.u32 4, %s27
          %s695 = ssub.s32 1024, 1024
          %696 = vsyncadd %s686, %s695
          %s697 = smul.addr %s693, 2
          %s698 = sadd.s32 %s26, %s697
          %s699 = smul.addr %s25, 32
          %s700 = sadd.s32 %s698, %s699
          %s701 = smul.addr %s700, 128
          %s702 = scalar_lea.hbm %s2, %s701
          %s703 = sshll.u32 %s689, 4
          %s704 = int_to_ptr.vmem [resolvable:$true] %s703
          %709 = dma.vmem_to_hbm [thread:$0]  %s704, 1024, %s702, %s686, 128, 128, 8
        $region44: #{tpu_custom_call.1} parent=27 // pred_fallthru
          _
      $region28: #{tpu_custom_call.1} parent=5 // pred_fallthru
        _
      %p710 = scmp.le.s32.totalorder 2, %s15
      // Predicated region
      $region45: #{tpu_custom_call.1} parent=5 // pred_check
        %p711 = pneg %p710
      $region46: #{tpu_custom_call.1} parent=5 // pred_check_branch
        %713 = sbr.rel (%p711) target = $region48
      $region47: #{tpu_custom_call.1} parent=5 // pred_region
        %s714 = ssub.s32 %s15, 2
        // Predicated region
        $region49: #{tpu_custom_call.1} parent=47 // pred_check
          %p715 = pneg %p121
        $region50: #{tpu_custom_call.1} parent=47 // pred_check_branch
          %717 = sbr.rel (%p715) target = $region52
        $region51: #{tpu_custom_call.1} parent=47 // pred_region
          %s718 = sand.u32 %s106, 1
          %s719 = scalar_lea.sflag [#allocation5], %s718
          %s720 = sand.u32 %s106, 1
          %s721 = smul.addr %s720, 64
          %s722 = scalar_lea.vmem [#allocation8], %s721
          %723 = dma.done %s719, 1024
        $region52: #{tpu_custom_call.1} parent=47 // pred_fallthru
          _
      $region48: #{tpu_custom_call.1} parent=5 // pred_fallthru
        _
    $region6: #{tpu_custom_call.1} parent=1 // loop_footer
      %s19 = sadd.s32 1, %s15
    $region7: #{tpu_custom_call.1} parent=1 // loop_footer_branch
      %14 = sbr.rel target = $region3
    $region8: #{tpu_custom_call.1} parent=1 // loop_exit
      _
    %724 = vsyncpa [#allocation4], 1
    %s725 = scalar_lea.sflag [#allocation4], 1
    %726 = vsyncpa %s725, 1
    %727 = vsyncpa [#allocation7], 1
    %728 = vsyncpa [#allocation5], 1
    %s729 = scalar_lea.sflag [#allocation5], 1
    %730 = vsyncpa %s729, 1

</llo_original>
